<compile_context>
chip_gen: v7x
topology: tpu7x:2x2x1
jax: 0.10.0
libtpu: 0.0.40
codegen_flags: <defaults>
</compile_context>

<pallas_src>
import functools

import jax
import jax.numpy as jnp
from jax.experimental import pallas as pl
from jax.experimental.pallas import tpu as pltpu


def _round_up(n: int, m: int) -> int:
    return ((n + m - 1) // m) * m


def _pick_hidden_chunk(hid_p: int, preferred: int) -> int:
    """Largest multiple of 128 that is <= preferred and divides hid_p."""
    c = min(max(_round_up(preferred, 128), 128), hid_p)
    while c > 128 and hid_p % c != 0:
        c -= 128
    return c


def _vmem_budget_bytes() -> int:
    """Generation-aware scoped-VMEM budget (leave headroom for Pallas internals)."""
    try:
        cap = pltpu.get_tpu_info().vmem_capacity_bytes
    except Exception:
        cap = 64 * 1024 * 1024        # conservative fallback (v7x-sized)
    return min((cap * 3) // 4, 100 * 1024 * 1024)


def _vmem_footprint(tb, th, in_p, out_p, x_bytes, out_bytes):
    return (2 * tb * in_p * x_bytes        # x tile (double buffered)
            + 2 * in_p * th * 2            # W1 chunk (bf16, double buffered)
            + 2 * th * out_p * 2           # W2 chunk (bf16, double buffered)
            + 2 * th * 4 + out_p * 4       # biases
            + 2 * tb * out_p * out_bytes   # output tile (double buffered)
            + tb * out_p * 4               # f32 accumulator scratch
            + tb * th * 4)                 # live hidden chunk (vregs / spill)


def mlp_kernel(x_ref, w1_ref, b1_ref, w2_ref, b2_ref, o_ref, acc_ref):
    """grid = (batch tiles, hidden chunks); hidden axis is a reduction."""
    h_idx = pl.program_id(1)

    @pl.when(h_idx == 0)
    def _init():
        acc_ref[...] = jnp.zeros_like(acc_ref)

    # Hidden chunk: (tb, th) f32 = bf16 x-tile @ bf16 W1-chunk (MXU, f32 accumulate).
    x = x_ref[...].astype(jnp.bfloat16)       # no-op if the wrapper already cast
    h = jnp.dot(x, w1_ref[...], preferred_element_type=jnp.float32)
    # Bias add + activation in f32 (v5e has no bf16 VPU).
    # TODO(synk): PyTorch module accepts an arbitrary activation nn.Module;
    # only ReLU is implemented here.
    h = jnp.maximum(h + b1_ref[...], 0.0)
    # Second matmul: bf16 only at the MXU boundary; chunk results accumulate in f32.
    acc_ref[...] += jnp.dot(h.astype(jnp.bfloat16), w2_ref[...],
                            preferred_element_type=jnp.float32)

    @pl.when(h_idx == pl.num_programs(1) - 1)
    def _finalize():
        o_ref[...] = (acc_ref[...] + b2_ref[...]).astype(o_ref.dtype)


def prepare_mlp_params(w1, b1, w2, b2):
    """One-time weight prep: transpose to (in, out), pad to 128 multiples, cast bf16.

    w1: (HID, IN), b1: (HID,), w2: (OUT, HID), b2: (OUT,)  -- torch nn.Linear layout.
    """
    HID, IN = w1.shape
    OUT = w2.shape[0]
    IN_p, HID_p, OUT_p = (_round_up(d, 128) for d in (IN, HID, OUT))
    w1t = jnp.pad(w1.T, ((0, IN_p - IN), (0, HID_p - HID))).astype(jnp.bfloat16)
    w2t = jnp.pad(w2.T, ((0, HID_p - HID), (0, OUT_p - OUT))).astype(jnp.bfloat16)
    b1r = jnp.pad(b1, (0, HID_p - HID)).reshape(1, HID_p).astype(jnp.float32)
    b2r = jnp.pad(b2, (0, OUT_p - OUT)).reshape(1, OUT_p).astype(jnp.float32)
    return w1t, b1r, w2t, b2r


@functools.partial(jax.jit,
                   static_argnames=("out_features", "tile_b", "tile_h", "out_dtype"))
def mlp_forward_prepared(x, w1t, b1r, w2t, b2r, *, out_features,
                         tile_b=256, tile_h=512, out_dtype=jnp.float32):
    """Fused MLP forward on pre-prepared weights.

    x   : (B, IN)        float32 (or bf16)
    w1t : (IN_p, HID_p)  bf16    (W1.T, padded)
    b1r : (1, HID_p)     f32
    w2t : (HID_p, OUT_p) bf16    (W2.T, padded)
    b2r : (1, OUT_p)     f32
    returns (B, out_features) out_dtype
    """
    B, IN = x.shape
    IN_p, HID_p = w1t.shape
    OUT_p = w2t.shape[1]

    # Batch tile: multiple of 8; guarantee >= 2 grid steps when possible (megacore).
    B8 = _round_up(B, 8)
    tb = min(_round_up(tile_b, 8), B8)
    if B8 >= 16:
        tb = min(tb, _round_up(B8 // 2, 8))

    # Hidden chunk: multiple of 128 that divides HID_p.
    th = _pick_hidden_chunk(HID_p, tile_h)

    # Fit the footprint into a generation-aware VMEM budget.
    x_ragged = (B8 != B) or (IN_p != IN)
    x_bytes = 2 if x_ragged else jnp.dtype(x.dtype).itemsize
    out_bytes = jnp.dtype(out_dtype).itemsize
    budget = _vmem_budget_bytes()
    while _vmem_footprint(tb, th, IN_p, OUT_p, x_bytes, out_bytes) > budget and tb > 8:
        tb = max(8, _round_up(tb // 2, 8))
    while _vmem_footprint(tb, th, IN_p, OUT_p, x_bytes, out_bytes) > budget and th > 128:
        th = _pick_hidden_chunk(HID_p, th - 128)

    B_p = _round_up(B, tb)
    grid = (B_p // tb, HID_p // th)

    # x: only pay a pad+cast HBM pass for ragged shapes; otherwise pass through
    # untouched (the kernel casts to bf16 on the fly).
    if B_p != B or IN_p != IN:
        x_in = jnp.pad(x, ((0, B_p - B), (0, IN_p - IN))).astype(jnp.bfloat16)
    else:
        x_in = x

    cost = pl.CostEstimate(
        flops=2 * B_p * (IN_p * HID_p + HID_p * OUT_p),
        transcendentals=0,
        bytes_accessed=(x_in.size * jnp.dtype(x_in.dtype).itemsize
                        + grid[0] * (w1t.size + w2t.size) * 2
                        + b1r.size * 4 + b2r.size * 4
                        + B_p * OUT_p * out_bytes),
    )

    y_p = pl.pallas_call(
        mlp_kernel,
        out_shape=jax.ShapeDtypeStruct((B_p, OUT_p), out_dtype),
        grid_spec=pltpu.PrefetchScalarGridSpec(
            num_scalar_prefetch=0,
            grid=grid,
            in_specs=[
                pl.BlockSpec((tb, IN_p), lambda i, h: (i, 0)),     # x tile
                pl.BlockSpec((IN_p, th), lambda i, h: (0, h)),     # W1^T chunk
                pl.BlockSpec((1, th), lambda i, h: (0, h)),        # b1 chunk
                pl.BlockSpec((th, OUT_p), lambda i, h: (h, 0)),    # W2^T chunk
                pl.BlockSpec((1, OUT_p), lambda i, h: (0, 0),
                             pipeline_mode=pl.Buffered(buffer_count=1)),  # b2 (const)
            ],
            out_specs=pl.BlockSpec((tb, OUT_p), lambda i, h: (i, 0)),
            scratch_shapes=[pltpu.VMEM((tb, OUT_p), jnp.float32)],
        ),
        compiler_params=pltpu.CompilerParams(
            dimension_semantics=("parallel", "arbitrary"),
            vmem_limit_bytes=budget,
        ),
        cost_estimate=cost,
    )(x_in, w1t, b1r, w2t, b2r)

    # Strip padding only when present.
    if B_p != B or OUT_p != out_features:
        y_p = y_p[:B, :out_features]
    return y_p


def mlp_forward(x, w1, b1, w2, b2, *, tile_b=256, tile_h=512, out_dtype=jnp.float32):
    """Convenience wrapper taking torch-layout weights (prep done per call)."""
    w1t, b1r, w2t, b2r = prepare_mlp_params(w1, b1, w2, b2)
    return mlp_forward_prepared(x, w1t, b1r, w2t, b2r, out_features=w2.shape[0],
                                tile_b=tile_b, tile_h=tile_h, out_dtype=out_dtype)


if __name__ == "__main__":
    # Small, deliberately ragged / non-128-aligned shapes that exercise padding,
    # the multi-tile batch axis and the multi-chunk hidden (reduction) axis.
    B, IN, HID, OUT = 200, 40, 300, 24

    key = jax.random.PRNGKey(0)
    kx, kw1, kb1, kw2, kb2 = jax.random.split(key, 5)

    x = jax.random.normal(kx, (B, IN), dtype=jnp.float32)

    # Deterministic "nn.Linear"-style init (uniform in +-1/sqrt(fan_in)).
    lim1 = 1.0 / IN ** 0.5
    lim2 = 1.0 / HID ** 0.5
    w1 = jax.random.uniform(kw1, (HID, IN), jnp.float32, -lim1, lim1)   # (out, in)
    b1 = jax.random.uniform(kb1, (HID,), jnp.float32, -lim1, lim1)
    w2 = jax.random.uniform(kw2, (OUT, HID), jnp.float32, -lim2, lim2)
    b2 = jax.random.uniform(kb2, (OUT,), jnp.float32, -lim2, lim2)

    # Weight prep hoisted out of the per-call path.
    w1t, b1r, w2t, b2r = prepare_mlp_params(w1, b1, w2, b2)

    # tile_b=128 / tile_h=128 -> grid (2 batch tiles, 3 hidden chunks):
    # exercises the accumulator init/finalize and streamed-weight paths.
    y = mlp_forward_prepared(x, w1t, b1r, w2t, b2r, out_features=OUT,
                             tile_b=128, tile_h=128)
    y = jax.block_until_ready(y)

    # Pure-JAX reference matching the kernel's numerics: operands rounded to bf16,
    # f32 accumulation, f32 bias+ReLU, bf16 hidden at the second-matmul boundary.
    f32 = jnp.float32
    hp = jax.lax.Precision.HIGHEST
    xb = x.astype(jnp.bfloat16).astype(f32)
    w1b = w1.astype(jnp.bfloat16).astype(f32)
    w2b = w2.astype(jnp.bfloat16).astype(f32)
    h_ref = jnp.maximum(jnp.dot(xb, w1b.T, precision=hp) + b1, 0.0)
    h_ref = h_ref.astype(jnp.bfloat16).astype(f32)
    y_ref = jnp.dot(h_ref, w2b.T, precision=hp) + b2

    assert y.shape == (B, OUT)
    err = jnp.max(jnp.abs(y - y_ref))
    assert jnp.allclose(y, y_ref, atol=5e-3, rtol=5e-3), \
        f"mismatch vs reference (max abs err {err})"
    print("KERNEL_OK")
</pallas_src>

<mosaic_0001>
module attributes {stable_mosaic.version = 11 : i64} {
  func.func @mlp_kernel(%arg0: i32, %arg1: i32, %arg2: memref<104x128xbf16, #tpu.memory_space<vmem>>, %arg3: memref<128x128xbf16, #tpu.memory_space<vmem>>, %arg4: memref<1x128xf32, #tpu.memory_space<vmem>>, %arg5: memref<128x128xbf16, #tpu.memory_space<vmem>>, %arg6: memref<1x128xf32, #tpu.memory_space<vmem>>, %arg7: memref<104x128xf32, #tpu.memory_space<vmem>>, %arg8: memref<104x128xf32, #tpu.memory_space<vmem>>) attributes {dimension_semantics = [#tpu.dimension_semantics<parallel>, #tpu.dimension_semantics<arbitrary>], iteration_bounds = array<i64: 2, 3>, scalar_prefetch = 0 : i64, scratch_operands = 1 : i64, tpu.core_type = #tpu.core_type<tc>, window_params = [{transform_indices = @transform_0, window_bounds = array<i64: 104, 128>}, {transform_indices = @transform_1, window_bounds = array<i64: 128, 128>}, {transform_indices = @transform_2, window_bounds = array<i64: 1, 128>}, {transform_indices = @transform_3, window_bounds = array<i64: 128, 128>}, {pipeline_mode = #tpu.pipeline_mode<synchronous>, transform_indices = @transform_4, window_bounds = array<i64: 1, 128>}, {transform_indices = @transform_5, window_bounds = array<i64: 104, 128>}]} {
    %c0_i32 = arith.constant 0 : i32
    %0 = arith.cmpi eq, %arg1, %c0_i32 : i32
    %1 = arith.extui %0 : i1 to i32
    %c0_i32_0 = arith.constant 0 : i32
    %2 = arith.cmpi ne, %1, %c0_i32_0 : i32
    scf.if %2 {
      %cst_15 = arith.constant 0.000000e+00 : f32
      %20 = vector.broadcast %cst_15 : f32 to vector<104x128xf32>
      %c0_16 = arith.constant 0 : index
      %c0_17 = arith.constant 0 : index
      %21 = vector.load %arg8[%c0_16, %c0_17] : memref<104x128xf32, #tpu.memory_space<vmem>>, vector<104x128xf32>
      tpu.vector_store %arg8[%c0_16, %c0_17], %20 {strides = array<i32>} : memref<104x128xf32, #tpu.memory_space<vmem>>, vector<104x128xf32>,
    } else {
    }
    %c0 = arith.constant 0 : index
    %c0_1 = arith.constant 0 : index
    %3 = vector.load %arg2[%c0, %c0_1] : memref<104x128xbf16, #tpu.memory_space<vmem>>, vector<104x128xbf16>
    %c0_2 = arith.constant 0 : index
    %c0_3 = arith.constant 0 : index
    %4 = vector.load %arg3[%c0_2, %c0_3] : memref<128x128xbf16, #tpu.memory_space<vmem>>, vector<128x128xbf16>
    %cst = arith.constant dense<0.000000e+00> : vector<104x128xf32>
    %5 = tpu.matmul %3, %4, %cst {dimension_numbers = #tpu.dot_dimension_numbers<[1], [0], [0], [1], [0, 0, 1, 1], [], []>} : vector<104x128xbf16>, vector<128x128xbf16>, vector<104x128xf32> -> vector<104x128xf32>
    %c0_4 = arith.constant 0 : index
    %c0_5 = arith.constant 0 : index
    %6 = vector.load %arg4[%c0_4, %c0_5] : memref<1x128xf32, #tpu.memory_space<vmem>>, vector<1x128xf32>
    %7 = vector.broadcast %6 : vector<1x128xf32> to vector<104x128xf32>
    %8 = arith.addf %5, %7 : vector<104x128xf32>
    %cst_6 = arith.constant 0.000000e+00 : f32
    %9 = vector.broadcast %cst_6 : f32 to vector<104x128xf32>
    %10 = arith.maximumf %8, %9 : vector<104x128xf32>
    %c0_7 = arith.constant 0 : index
    %c0_8 = arith.constant 0 : index
    %11 = vector.load %arg8[%c0_7, %c0_8] : memref<104x128xf32, #tpu.memory_space<vmem>>, vector<104x128xf32>
    %12 = arith.truncf %10 : vector<104x128xf32> to vector<104x128xbf16>
    %c0_9 = arith.constant 0 : index
    %c0_10 = arith.constant 0 : index
    %13 = vector.load %arg5[%c0_9, %c0_10] : memref<128x128xbf16, #tpu.memory_space<vmem>>, vector<128x128xbf16>
    %cst_11 = arith.constant dense<0.000000e+00> : vector<104x128xf32>
    %14 = tpu.matmul %12, %13, %cst_11 {dimension_numbers = #tpu.dot_dimension_numbers<[1], [0], [0], [1], [0, 0, 1, 1], [], []>} : vector<104x128xbf16>, vector<128x128xbf16>, vector<104x128xf32> -> vector<104x128xf32>
    %15 = arith.addf %11, %14 : vector<104x128xf32>
    %c0_12 = arith.constant 0 : index
    %c0_13 = arith.constant 0 : index
    %16 = vector.load %arg8[%c0_12, %c0_13] : memref<104x128xf32, #tpu.memory_space<vmem>>, vector<104x128xf32>
    tpu.vector_store %arg8[%c0_12, %c0_13], %15 {strides = array<i32>} : memref<104x128xf32, #tpu.memory_space<vmem>>, vector<104x128xf32>,
    %c2_i32 = arith.constant 2 : i32
    %17 = arith.cmpi eq, %arg1, %c2_i32 : i32
    %18 = arith.extui %17 : i1 to i32
    %c0_i32_14 = arith.constant 0 : i32
    %19 = arith.cmpi ne, %18, %c0_i32_14 : i32
    scf.if %19 {
      %c0_15 = arith.constant 0 : index
      %c0_16 = arith.constant 0 : index
      %20 = vector.load %arg8[%c0_15, %c0_16] : memref<104x128xf32, #tpu.memory_space<vmem>>, vector<104x128xf32>
      %c0_17 = arith.constant 0 : index
      %c0_18 = arith.constant 0 : index
      %21 = vector.load %arg6[%c0_17, %c0_18] : memref<1x128xf32, #tpu.memory_space<vmem>>, vector<1x128xf32>
      %22 = vector.broadcast %21 : vector<1x128xf32> to vector<104x128xf32>
      %23 = arith.addf %20, %22 : vector<104x128xf32>
      %c0_19 = arith.constant 0 : index
      %c0_20 = arith.constant 0 : index
      %24 = vector.load %arg7[%c0_19, %c0_20] : memref<104x128xf32, #tpu.memory_space<vmem>>, vector<104x128xf32>
      tpu.vector_store %arg7[%c0_19, %c0_20], %23 {strides = array<i32>} : memref<104x128xf32, #tpu.memory_space<vmem>>, vector<104x128xf32>,
    } else {
    }
    return
  }
  func.func @transform_0(%arg0: i32, %arg1: i32) -> (i32, i32) {
    %c0_i32 = arith.constant 0 : i32
    %c0_i32_0 = arith.constant 0 : i32
    return %arg0, %c0_i32 : i32, i32
  }
  func.func @transform_1(%arg0: i32, %arg1: i32) -> (i32, i32) {
    %c0_i32 = arith.constant 0 : i32
    %c0_i32_0 = arith.constant 0 : i32
    return %c0_i32, %arg1 : i32, i32
  }
  func.func @transform_2(%arg0: i32, %arg1: i32) -> (i32, i32) {
    %c0_i32 = arith.constant 0 : i32
    %c0_i32_0 = arith.constant 0 : i32
    return %c0_i32, %arg1 : i32, i32
  }
  func.func @transform_3(%arg0: i32, %arg1: i32) -> (i32, i32) {
    %c0_i32 = arith.constant 0 : i32
    %c0_i32_0 = arith.constant 0 : i32
    return %arg1, %c0_i32 : i32, i32
  }
  func.func @transform_4(%arg0: i32, %arg1: i32) -> (i32, i32) {
    %c0_i32 = arith.constant 0 : i32
    %c0_i32_0 = arith.constant 0 : i32
    %c0_i32_1 = arith.constant 0 : i32
    return %c0_i32, %c0_i32_0 : i32, i32
  }
  func.func @transform_5(%arg0: i32, %arg1: i32) -> (i32, i32) {
    %c0_i32 = arith.constant 0 : i32
    %c0_i32_0 = arith.constant 0 : i32
    return %arg0, %c0_i32 : i32, i32
  }
}

</mosaic_0001>

<llo_original>
// kernel: mlp_forward_prepared.1
$region0: #{mlp_forward_prepared.1}
  #allocation0 [shape = 'u32[]', space=smem, size = 0x4, offset = 0x4, fixed_abs, tag = 'smem constant byte address 0x4 - core index']
  #allocation1 [shape = 'u32[144,128]{1,0:T(1,128)}', space=vmem, size = 0x12000, scoped, tag = 'internal scratch']
  #allocation2 [shape = 'f32[104,128]{1,0:T(8,128)}', space=vmem, size = 0xd000, scoped, tag = 'scratch operand']
  %s0 = inlined_call_operand.vmem [shape: bf16[208,128], index: 0, kind: input, shape index: {}]
  %s1 = inlined_call_operand.vmem [shape: bf16[128,384], index: 1, kind: input, shape index: {}]
  %s2 = inlined_call_operand.vmem [shape: f32[1,384], index: 2, kind: input, shape index: {}]
  %s3 = inlined_call_operand.vmem [shape: bf16[384,128], index: 3, kind: input, shape index: {}]
  %s4 = inlined_call_operand.vmem [shape: f32[1,128], index: 4, kind: input, shape index: {}]
  %s5 = inlined_call_operand.vmem [shape: f32[208,128], index: 5, kind: output, shape index: {}]
  %s6 = sld [smem:[#allocation0]]
  $region102: #{mlp_forward_prepared.1} parent=0
    _
  %s8 = ssub.s32 1, %s6
  %s9 = scalar_select 0, %s8, %s6
  $region1: #{mlp_forward_prepared.1} parent=0
    #allocation3 [shape = 'u8[65536]{0}', space=vmem, size = 0x10000, scoped, tag = 'input window, operand 1']
    loop: start=0, step=1, limit=8
    $region2: #{mlp_forward_prepared.1} parent=1 // loop_pre_header
      _
    $region3: #{mlp_forward_prepared.1} parent=1 // loop_header
      %s11 = sphi 0, %s15
      %p12 = scmp.ge.s32.totalorder %s11, 8
      %s18 = sphi 0, %s30
      %s19 = sphi 0, %s26
      %s20 = sphi 0, %s18
      %s21 = sphi 0, %s19
      %s22 = sphi 0, %s20
      %s23 = sphi 0, %s21
      %s33 = sphi 0, %s35
      %s36 = sphi 0, %s33
      %s37 = sphi 0, %s36
      %s53 = sphi 0, %s37
      %s59 = sphi 0, %s61
      %s62 = sphi 0, %s59
      %s63 = sphi 0, %s62
      %s79 = sphi 0, %s63
      %s85 = sphi 0, %s87
      %s88 = sphi 0, %s85
      %s89 = sphi 0, %s88
      %s105 = sphi 0, %s89
      %s111 = sphi 0, %s113
      %s114 = sphi 0, %s111
      %s115 = sphi 0, %s114
      %s131 = sphi 0, %s115
      %s135 = sphi 0, %s135
      %s137 = sphi 0, %s135
      %s138 = sphi 0, %s137
      %s152 = sphi 0, %s138
      %s158 = sphi 0, %s160
      %s161 = sphi 0, %s158
      %s162 = sphi 0, %s161
      %s178 = sphi 0, %s162
    $region4: #{mlp_forward_prepared.1} parent=1 // loop_header_branch
      %14 = sbr.rel (%p12) target = $region8
    $region5: #{mlp_forward_prepared.1} parent=1 // loop_body
      %s16 = ssub.s32 %s11, 1
      %s17 = ssub.s32 %s11, 2
      %s24 = sadd.s32 1, %s19
      %p25 = scmp.ge.s32.totalorder %s24, 3
      %s26 = scalar_select %p25, 0, %s24
      %s27 = sadd.s32 1, %s18
      %s28 = scalar_select %p25, %s27, %s18
      %p29 = scmp.ge.s32.totalorder %s28, 2
      %s30 = scalar_select %p29, 0, %s28
      %s31 = ssub.s32 %s18, %s30
      %p32 = scmp.eq.s32.totalorder %s31, 0
      %s34 = sadd.s32 %s33, 1
      %s35 = scalar_select %p32, %s33, %s34
      %p38 = pneg %p32
      %p39 = scmp.eq.s32.totalorder %s11, 5
      %p40 = por %p38, %p39
      %p41 = scmp.ne.s32.totalorder %s33, %s36
      %p42 = scmp.eq.s32.totalorder %s11, 0
      %p43 = por %p41, %p42
      %p44 = scmp.ne.s32.totalorder %s33, %s36
      %p45 = scmp.eq.s32.totalorder %s16, 5
      %p46 = por %p44, %p45
      %p47 = scmp.ne.s32.totalorder %s36, %s37
      %p48 = scmp.eq.s32.totalorder %s16, 0
      %p49 = por %p47, %p48
      %p50 = scmp.ne.s32.totalorder %s36, %s37
      %p51 = scmp.eq.s32.totalorder %s17, 5
      %p52 = por %p50, %p51
      %p54 = scmp.ne.s32.totalorder %s37, %s53
      %p55 = scmp.eq.s32.totalorder %s17, 0
      %p56 = por %p54, %p55
      %s57 = ssub.s32 %s19, %s26
      %p58 = scmp.eq.s32.totalorder %s57, 0
      %s60 = sadd.s32 %s59, 1
      %s61 = scalar_select %p58, %s59, %s60
      %p64 = pneg %p58
      %p65 = scmp.eq.s32.totalorder %s11, 5
      %p66 = por %p64, %p65
      %p67 = scmp.ne.s32.totalorder %s59, %s62
      %p68 = scmp.eq.s32.totalorder %s11, 0
      %p69 = por %p67, %p68
      %p70 = scmp.ne.s32.totalorder %s59, %s62
      %p71 = scmp.eq.s32.totalorder %s16, 5
      %p72 = por %p70, %p71
      %p73 = scmp.ne.s32.totalorder %s62, %s63
      %p74 = scmp.eq.s32.totalorder %s16, 0
      %p75 = por %p73, %p74
      %p76 = scmp.ne.s32.totalorder %s62, %s63
      %p77 = scmp.eq.s32.totalorder %s17, 5
      %p78 = por %p76, %p77
      %p80 = scmp.ne.s32.totalorder %s63, %s79
      %p81 = scmp.eq.s32.totalorder %s17, 0
      %p82 = por %p80, %p81
      %s83 = ssub.s32 %s19, %s26
      %p84 = scmp.eq.s32.totalorder %s83, 0
      %s86 = sadd.s32 %s85, 1
      %s87 = scalar_select %p84, %s85, %s86
      %p90 = pneg %p84
      %p91 = scmp.eq.s32.totalorder %s11, 5
      %p92 = por %p90, %p91
      %p93 = scmp.ne.s32.totalorder %s85, %s88
      %p94 = scmp.eq.s32.totalorder %s11, 0
      %p95 = por %p93, %p94
      %p96 = scmp.ne.s32.totalorder %s85, %s88
      %p97 = scmp.eq.s32.totalorder %s16, 5
      %p98 = por %p96, %p97
      %p99 = scmp.ne.s32.totalorder %s88, %s89
      %p100 = scmp.eq.s32.totalorder %s16, 0
      %p101 = por %p99, %p100
      %p102 = scmp.ne.s32.totalorder %s88, %s89
      %p103 = scmp.eq.s32.totalorder %s17, 5
      %p104 = por %p102, %p103
      %p106 = scmp.ne.s32.totalorder %s89, %s105
      %p107 = scmp.eq.s32.totalorder %s17, 0
      %p108 = por %p106, %p107
      %s109 = ssub.s32 %s19, %s26
      %p110 = scmp.eq.s32.totalorder %s109, 0
      %s112 = sadd.s32 %s111, 1
      %s113 = scalar_select %p110, %s111, %s112
      %p116 = pneg %p110
      %p117 = scmp.eq.s32.totalorder %s11, 5
      %p118 = por %p116, %p117
      %p119 = scmp.ne.s32.totalorder %s111, %s114
      %p120 = scmp.eq.s32.totalorder %s11, 0
      %p121 = por %p119, %p120
      %p122 = scmp.ne.s32.totalorder %s111, %s114
      %p123 = scmp.eq.s32.totalorder %s16, 5
      %p124 = por %p122, %p123
      %p125 = scmp.ne.s32.totalorder %s114, %s115
      %p126 = scmp.eq.s32.totalorder %s16, 0
      %p127 = por %p125, %p126
      %p128 = scmp.ne.s32.totalorder %s114, %s115
      %p129 = scmp.eq.s32.totalorder %s17, 5
      %p130 = por %p128, %p129
      %p132 = scmp.ne.s32.totalorder %s115, %s131
      %p133 = scmp.eq.s32.totalorder %s17, 0
      %p134 = por %p132, %p133
      %s136 = sadd.s32 %s135, 1
      %p139 = scmp.eq.s32.totalorder %s11, 5
      %p140 = scmp.ne.s32.totalorder %s135, %s137
      %p141 = scmp.eq.s32.totalorder %s11, 0
      %p142 = por %p140, %p141
      %p143 = scmp.ne.s32.totalorder %s135, %s137
      %p144 = scmp.eq.s32.totalorder %s16, 5
      %p145 = por %p143, %p144
      %p146 = scmp.ne.s32.totalorder %s137, %s138
      %p147 = scmp.eq.s32.totalorder %s16, 0
      %p148 = por %p146, %p147
      %p149 = scmp.ne.s32.totalorder %s137, %s138
      %p150 = scmp.eq.s32.totalorder %s17, 5
      %p151 = por %p149, %p150
      %p153 = scmp.ne.s32.totalorder %s138, %s152
      %p154 = scmp.eq.s32.totalorder %s17, 0
      %p155 = por %p153, %p154
      %s156 = ssub.s32 %s18, %s30
      %p157 = scmp.eq.s32.totalorder %s156, 0
      %s159 = sadd.s32 %s158, 1
      %s160 = scalar_select %p157, %s158, %s159
      %p163 = pneg %p157
      %p164 = scmp.eq.s32.totalorder %s11, 5
      %p165 = por %p163, %p164
      %p166 = scmp.ne.s32.totalorder %s158, %s161
      %p167 = scmp.eq.s32.totalorder %s11, 0
      %p168 = por %p166, %p167
      %p169 = scmp.ne.s32.totalorder %s158, %s161
      %p170 = scmp.eq.s32.totalorder %s16, 5
      %p171 = por %p169, %p170
      %p172 = scmp.ne.s32.totalorder %s161, %s162
      %p173 = scmp.eq.s32.totalorder %s16, 0
      %p174 = por %p172, %p173
      %p175 = scmp.ne.s32.totalorder %s161, %s162
      %p176 = scmp.eq.s32.totalorder %s17, 5
      %p177 = por %p175, %p176
      %p179 = scmp.ne.s32.totalorder %s162, %s178
      %p180 = scmp.eq.s32.totalorder %s17, 0
      %p181 = por %p179, %p180
      %p182 = scmp.le.s32.totalorder 1, %s11
      %p183 = scmp.lt.s32.totalorder %s11, 7
      %p184 = pnand %p182, %p183
      %p185 = pneg %p184
      // Predicated region
      $region9: #{mlp_forward_prepared.1} parent=5 // pred_check
        _
      $region10: #{mlp_forward_prepared.1} parent=5 // pred_check_branch
        %187 = sbr.rel (%p184) target = $region12
      $region11: #{mlp_forward_prepared.1} parent=5 // pred_region
        %s188 = ssub.s32 %s11, 1
        // Predicated region
        $region13: #{mlp_forward_prepared.1} parent=11 // pred_check
          %p189 = pneg %p148
        $region14: #{mlp_forward_prepared.1} parent=11 // pred_check_branch
          %191 = sbr.rel (%p189) target = $region16
        $region15: #{mlp_forward_prepared.1} parent=11 // pred_region
          _
        $region16: #{mlp_forward_prepared.1} parent=11 // pred_fallthru
          _
      $region12: #{mlp_forward_prepared.1} parent=5 // pred_fallthru
        _
      %p192 = scmp.lt.s32.totalorder %s11, 6
      // Predicated region
      $region17: #{mlp_forward_prepared.1} parent=5 // pred_check
        %p193 = pneg %p192
      $region18: #{mlp_forward_prepared.1} parent=5 // pred_check_branch
        %195 = sbr.rel (%p193) target = $region20
      $region19: #{mlp_forward_prepared.1} parent=5 // pred_region
        // Predicated region
        $region21: #{mlp_forward_prepared.1} parent=19 // pred_check
          %p196 = pneg %p43
        $region22: #{mlp_forward_prepared.1} parent=19 // pred_check_branch
          %198 = sbr.rel (%p196) target = $region24
        $region23: #{mlp_forward_prepared.1} parent=19 // pred_region
          %s199 = smul.u32 13, %s18
          %p200 = scmp.lt.s32.totalorder %s199, 25
          %s201 = scalar_select %p200, %s199, 25
          %s202 = smul.addr %s201, 4
          %s203 = scalar_lea.vmem %s0, %s202
          %s204 = smul.u32 13, %s18
        $region24: #{mlp_forward_prepared.1} parent=19 // pred_fallthru
          _
        // Predicated region
        $region25: #{mlp_forward_prepared.1} parent=19 // pred_check
          %p205 = pneg %p69
        $region26: #{mlp_forward_prepared.1} parent=19 // pred_check_branch
          %207 = sbr.rel (%p205) target = $region28
        $region27: #{mlp_forward_prepared.1} parent=19 // pred_region
          %s208 = sand.u32 %s59, 1
          %s209 = sand.u32 %s59, 1
          %s210 = smul.addr %s209, 64
          %s211 = scalar_lea.vmem [#allocation3], %s210
          %s212 = smul.addr %s19, 4
          %s213 = scalar_lea.vmem %s1, %s212
          // Predicated region
          $region29: #{mlp_forward_prepared.1} parent=27 // pred_check
            _
          $region30: #{mlp_forward_prepared.1} parent=27 // pred_check_branch
            %215 = sbr.rel (0) target = $region32
          $region31: #{mlp_forward_prepared.1} parent=27 // pred_region
            // Predicated region
            $region33: #{mlp_forward_prepared.1} parent=31 // pred_check
              _
            $region34: #{mlp_forward_prepared.1} parent=31 // pred_check_branch
              %217 = sbr.rel target = $region36
            $region35: #{mlp_forward_prepared.1} parent=31 // pred_region
              // Predicated region
              $region48: #{mlp_forward_prepared.1} parent=35 // pred_check
                _
              $region49: #{mlp_forward_prepared.1} parent=35 // pred_check_branch
                %262 = sbr.rel (0) target = $region51
              $region50: #{mlp_forward_prepared.1} parent=35 // pred_region
                loop: start=0, step=1, limit=1
                $region52: #{mlp_forward_prepared.1} parent=50 // loop_pre_header
                  _
                $region53: #{mlp_forward_prepared.1} parent=50 // loop_header
                  %s264 = sphi 0, %s268
                  %p265 = scmp.ge.s32.totalorder %s264, 1
                  %s269 = sphi %s213, %s213
                  %s270 = sphi %s211, %s211
                $region54: #{mlp_forward_prepared.1} parent=50 // loop_header_branch
                  %267 = sbr.rel (%p265) target = $region58
                $region55: #{mlp_forward_prepared.1} parent=50 // loop_body
                  _
                $region56: #{mlp_forward_prepared.1} parent=50 // loop_footer
                  %s268 = sadd.s32 1, %s264
                $region57: #{mlp_forward_prepared.1} parent=50 // loop_footer_branch
                  %263 = sbr.rel target = $region53
                $region58: #{mlp_forward_prepared.1} parent=50 // loop_exit
                  _
                loop: start=0, step=1, limit=1
                $region59: #{mlp_forward_prepared.1} parent=50 // loop_pre_header
                  _
                $region60: #{mlp_forward_prepared.1} parent=50 // loop_header
                  %s273 = sphi 0, %s277
                  %p274 = scmp.ge.s32.totalorder %s273, 1
                  %s278 = sphi %s213, %s213
                  %s279 = sphi %s211, %s211
                $region61: #{mlp_forward_prepared.1} parent=50 // loop_header_branch
                  %276 = sbr.rel (%p274) target = $region65
                $region62: #{mlp_forward_prepared.1} parent=50 // loop_body
                  %v280 = vld [vmem:[%s278] sm:$0xf]
                  %281 = vst [vmem:[%s279] sm:$0xf] %v280
                  %v282 = vld [vmem:[%s278 + $0xc] sm:$0xf]
                  %283 = vst [vmem:[%s279 + $0x4] sm:$0xf] %v282
                  %v284 = vld [vmem:[%s278 + $0x18] sm:$0xf]
                  %285 = vst [vmem:[%s279 + $0x8] sm:$0xf] %v284
                  %v286 = vld [vmem:[%s278 + $0x24] sm:$0xf]
                  %287 = vst [vmem:[%s279 + $0xc] sm:$0xf] %v286
                  %v288 = vld [vmem:[%s278 + $0x30] sm:$0xf]
                  %289 = vst [vmem:[%s279 + $0x10] sm:$0xf] %v288
                  %v290 = vld [vmem:[%s278 + $0x3c] sm:$0xf]
                  %291 = vst [vmem:[%s279 + $0x14] sm:$0xf] %v290
                  %v292 = vld [vmem:[%s278 + $0x48] sm:$0xf]
                  %293 = vst [vmem:[%s279 + $0x18] sm:$0xf] %v292
                  %v294 = vld [vmem:[%s278 + $0x54] sm:$0xf]
                  %295 = vst [vmem:[%s279 + $0x1c] sm:$0xf] %v294
                  %v296 = vld [vmem:[%s278 + $0x60] sm:$0xf]
                  %297 = vst [vmem:[%s279 + $0x20] sm:$0xf] %v296
                  %v298 = vld [vmem:[%s278 + $0x6c] sm:$0xf]
                  %299 = vst [vmem:[%s279 + $0x24] sm:$0xf] %v298
                  %v300 = vld [vmem:[%s278 + $0x78] sm:$0xf]
                  %301 = vst [vmem:[%s279 + $0x28] sm:$0xf] %v300
                  %v302 = vld [vmem:[%s278 + $0x84] sm:$0xf]
                  %303 = vst [vmem:[%s279 + $0x2c] sm:$0xf] %v302
                  %v304 = vld [vmem:[%s278 + $0x90] sm:$0xf]
                  %305 = vst [vmem:[%s279 + $0x30] sm:$0xf] %v304
                  %v306 = vld [vmem:[%s278 + $0x9c] sm:$0xf]
                  %307 = vst [vmem:[%s279 + $0x34] sm:$0xf] %v306
                  %v308 = vld [vmem:[%s278 + $0xa8] sm:$0xf]
                  %309 = vst [vmem:[%s279 + $0x38] sm:$0xf] %v308
                  %v310 = vld [vmem:[%s278 + $0xb4] sm:$0xf]
                  %311 = vst [vmem:[%s279 + $0x3c] sm:$0xf] %v310
                $region63: #{mlp_forward_prepared.1} parent=50 // loop_footer
                  %s277 = sadd.s32 1, %s273
                $region64: #{mlp_forward_prepared.1} parent=50 // loop_footer_branch
                  %272 = sbr.rel target = $region60
                $region65: #{mlp_forward_prepared.1} parent=50 // loop_exit
                  _
              $region51: #{mlp_forward_prepared.1} parent=35 // pred_fallthru
                _
            $region36: #{mlp_forward_prepared.1} parent=31 // pred_fallthru
              _
            // Predicated region
            $region37: #{mlp_forward_prepared.1} parent=31 // pred_check
              _
            $region38: #{mlp_forward_prepared.1} parent=31 // pred_check_branch
              %219 = sbr.rel (0) target = $region40
            $region39: #{mlp_forward_prepared.1} parent=31 // pred_region
              loop: start=0, step=1, limit=1
              $region41: #{mlp_forward_prepared.1} parent=39 // loop_pre_header
                _
              $region42: #{mlp_forward_prepared.1} parent=39 // loop_header
                %s222 = sphi 0, %s226
                %p223 = scmp.ge.s32.totalorder %s222, 1
                %s227 = sphi %s213, %s213
                %s228 = sphi %s211, %s211
              $region43: #{mlp_forward_prepared.1} parent=39 // loop_header_branch
                %225 = sbr.rel (%p223) target = $region47
              $region44: #{mlp_forward_prepared.1} parent=39 // loop_body
                %v229 = vld [vmem:[%s227] sm:$0xf]
                %230 = vst [vmem:[%s228] sm:$0xf] %v229
                %v231 = vld [vmem:[%s227 + $0xc] sm:$0xf]
                %232 = vst [vmem:[%s228 + $0x4] sm:$0xf] %v231
                %v233 = vld [vmem:[%s227 + $0x18] sm:$0xf]
                %234 = vst [vmem:[%s228 + $0x8] sm:$0xf] %v233
                %v235 = vld [vmem:[%s227 + $0x24] sm:$0xf]
                %236 = vst [vmem:[%s228 + $0xc] sm:$0xf] %v235
                %v237 = vld [vmem:[%s227 + $0x30] sm:$0xf]
                %238 = vst [vmem:[%s228 + $0x10] sm:$0xf] %v237
                %v239 = vld [vmem:[%s227 + $0x3c] sm:$0xf]
                %240 = vst [vmem:[%s228 + $0x14] sm:$0xf] %v239
                %v241 = vld [vmem:[%s227 + $0x48] sm:$0xf]
                %242 = vst [vmem:[%s228 + $0x18] sm:$0xf] %v241
                %v243 = vld [vmem:[%s227 + $0x54] sm:$0xf]
                %244 = vst [vmem:[%s228 + $0x1c] sm:$0xf] %v243
                %v245 = vld [vmem:[%s227 + $0x60] sm:$0xf]
                %246 = vst [vmem:[%s228 + $0x20] sm:$0xf] %v245
                %v247 = vld [vmem:[%s227 + $0x6c] sm:$0xf]
                %248 = vst [vmem:[%s228 + $0x24] sm:$0xf] %v247
                %v249 = vld [vmem:[%s227 + $0x78] sm:$0xf]
                %250 = vst [vmem:[%s228 + $0x28] sm:$0xf] %v249
                %v251 = vld [vmem:[%s227 + $0x84] sm:$0xf]
                %252 = vst [vmem:[%s228 + $0x2c] sm:$0xf] %v251
                %v253 = vld [vmem:[%s227 + $0x90] sm:$0xf]
                %254 = vst [vmem:[%s228 + $0x30] sm:$0xf] %v253
                %v255 = vld [vmem:[%s227 + $0x9c] sm:$0xf]
                %256 = vst [vmem:[%s228 + $0x34] sm:$0xf] %v255
                %v257 = vld [vmem:[%s227 + $0xa8] sm:$0xf]
                %258 = vst [vmem:[%s228 + $0x38] sm:$0xf] %v257
                %v259 = vld [vmem:[%s227 + $0xb4] sm:$0xf]
                %260 = vst [vmem:[%s228 + $0x3c] sm:$0xf] %v259
              $region45: #{mlp_forward_prepared.1} parent=39 // loop_footer
                %s226 = sadd.s32 1, %s222
              $region46: #{mlp_forward_prepared.1} parent=39 // loop_footer_branch
                %221 = sbr.rel target = $region42
              $region47: #{mlp_forward_prepared.1} parent=39 // loop_exit
                _
            $region40: #{mlp_forward_prepared.1} parent=31 // pred_fallthru
              _
          $region32: #{mlp_forward_prepared.1} parent=27 // pred_fallthru
            _
          %312 = vnop
        $region28: #{mlp_forward_prepared.1} parent=19 // pred_fallthru
          _
        // Predicated region
        $region66: #{mlp_forward_prepared.1} parent=19 // pred_check
          %p313 = pneg %p95
        $region67: #{mlp_forward_prepared.1} parent=19 // pred_check_branch
          %315 = sbr.rel (%p313) target = $region69
        $region68: #{mlp_forward_prepared.1} parent=19 // pred_region
          %p316 = scmp.lt.s32.totalorder %s19, 2
          %s317 = scalar_select %p316, %s19, 2
          %s318 = scalar_lea.vmem %s2, %s317
        $region69: #{mlp_forward_prepared.1} parent=19 // pred_fallthru
          _
        // Predicated region
        $region70: #{mlp_forward_prepared.1} parent=19 // pred_check
          %p319 = pneg %p121
        $region71: #{mlp_forward_prepared.1} parent=19 // pred_check_branch
          %321 = sbr.rel (%p319) target = $region73
        $region72: #{mlp_forward_prepared.1} parent=19 // pred_region
          %s322 = smul.u32 16, %s19
          %p323 = scmp.lt.s32.totalorder %s322, 47
          %s324 = scalar_select %p323, %s322, 47
          %s325 = smul.addr %s324, 4
          %s326 = scalar_lea.vmem %s3, %s325
          %s327 = smul.u32 16, %s19
        $region73: #{mlp_forward_prepared.1} parent=19 // pred_fallthru
          _
      $region20: #{mlp_forward_prepared.1} parent=5 // pred_fallthru
        _
      %p328 = scmp.le.s32.totalorder 1, %s11
      %p329 = scmp.lt.s32.totalorder %s11, 7
      %p330 = pnand %p328, %p329
      %p331 = pneg %p330
      // Predicated region
      $region74: #{mlp_forward_prepared.1} parent=5 // pred_check
        _
      $region75: #{mlp_forward_prepared.1} parent=5 // pred_check_branch
        %333 = sbr.rel (%p330) target = $region77
      $region76: #{mlp_forward_prepared.1} parent=5 // pred_region
        %s334 = ssub.s32 %s11, 1
        %s335 = sand.u32 %s62, 1
        %s336 = sand.u32 %s62, 1
        %s337 = smul.addr %s336, 64
        %s338 = scalar_lea.vmem [#allocation3], %s337
        // Predicated region
        $region78: #{mlp_forward_prepared.1} parent=76 // pred_check
          %p339 = pneg %p75
        $region79: #{mlp_forward_prepared.1} parent=76 // pred_check_branch
          %341 = sbr.rel (%p339) target = $region81
        $region80: #{mlp_forward_prepared.1} parent=76 // pred_region
          _
        $region81: #{mlp_forward_prepared.1} parent=76 // pred_fallthru
          _
        %s342 = smul.u32 13, %s20
        %p343 = scmp.lt.s32.totalorder %s342, 25
        %s344 = scalar_select %p343, %s342, 25
        %s345 = smul.addr %s344, 4
        %s346 = scalar_lea.vmem %s0, %s345
        %p347 = pneg %p49
        %p348 = pneg %p46
        %s349 = sand.u32 %s62, 1
        %s350 = sand.u32 %s62, 1
        %s351 = smul.addr %s350, 64
        %s352 = scalar_lea.vmem [#allocation3], %s351
        %p353 = pneg %p75
        %p354 = pneg %p72
        %p355 = scmp.lt.s32.totalorder %s21, 2
        %s356 = scalar_select %p355, %s21, 2
        %s357 = scalar_lea.vmem %s2, %s356
        %p358 = pneg %p101
        %p359 = pneg %p98
        %s360 = smul.u32 16, %s21
        %p361 = scmp.lt.s32.totalorder %s360, 47
        %s362 = scalar_select %p361, %s360, 47
        %s363 = smul.addr %s362, 4
        %s364 = scalar_lea.vmem %s3, %s363
        %p365 = pneg %p127
        %p366 = pneg %p124
        %p367 = pneg %p148
        %p368 = pneg %p145
        %p369 = pneg %p174
        %p370 = pneg %p171
        %s371 = smul.u32 13, %s20
        %p372 = scmp.lt.s32.totalorder %s371, 25
        %s373 = scalar_select %p372, %s371, 25
        %s374 = smul.addr %s373, 8
        %s375 = scalar_lea.vmem %s5, %s374
        %s376 = smul.u32 13, %s20
        %p377 = scmp.lt.s32.totalorder %s376, 25
        %s378 = scalar_select %p377, %s376, 25
        %s379 = smul.addr %s378, 4
        %s380 = scalar_lea.vmem %s0, %s379
        %s381 = smul.u32 13, %s20
        %p382 = scmp.lt.s32.totalorder %s21, 2
        %s383 = scalar_select %p382, %s21, 2
        %s384 = scalar_lea.vmem %s2, %s383
        %s385 = smul.u32 16, %s21
        %p386 = scmp.lt.s32.totalorder %s385, 47
        %s387 = scalar_select %p386, %s385, 47
        %s388 = smul.addr %s387, 4
        %s389 = scalar_lea.vmem %s3, %s388
        %s390 = smul.u32 16, %s21
        %s391 = smul.u32 13, %s20
        %p392 = scmp.lt.s32.totalorder %s391, 25
        %s393 = scalar_select %p392, %s391, 25
        %s394 = smul.addr %s393, 8
        %s395 = scalar_lea.vmem %s5, %s394
        %s396 = smul.u32 13, %s20
        %p398 = scmp.eq.s32.totalorder %s21, 0
        // Predicated region
        $region82: #{mlp_forward_prepared.1} parent=76 // pred_check
          %p399 = pneg %p398
        $region83: #{mlp_forward_prepared.1} parent=76 // pred_check_branch
          %401 = sbr.rel (%p399) target = $region85
        $region84: #{mlp_forward_prepared.1} parent=76 // pred_region
          %402 = vst [vmem:[#allocation2] sm:$0xff] 0.0
          %403 = vst [vmem:[#allocation2 + $0x8] sm:$0xff] 0.0
          %404 = vst [vmem:[#allocation2 + $0x10] sm:$0xff] 0.0
          %405 = vst [vmem:[#allocation2 + $0x18] sm:$0xff] 0.0
          %406 = vst [vmem:[#allocation2 + $0x20] sm:$0xff] 0.0
          %407 = vst [vmem:[#allocation2 + $0x28] sm:$0xff] 0.0
          %408 = vst [vmem:[#allocation2 + $0x30] sm:$0xff] 0.0
          %409 = vst [vmem:[#allocation2 + $0x38] sm:$0xff] 0.0
          %410 = vst [vmem:[#allocation2 + $0x40] sm:$0xff] 0.0
          %411 = vst [vmem:[#allocation2 + $0x48] sm:$0xff] 0.0
          %412 = vst [vmem:[#allocation2 + $0x50] sm:$0xff] 0.0
          %413 = vst [vmem:[#allocation2 + $0x58] sm:$0xff] 0.0
          %414 = vst [vmem:[#allocation2 + $0x60] sm:$0xff] 0.0
        $region85: #{mlp_forward_prepared.1} parent=76 // pred_fallthru
          _
        %v415 = vld [vmem:[%s380] sm:$0xf]
        %v416 = vld [vmem:[%s380 + $0x4] sm:$0xf]
        %v417 = vld [vmem:[%s380 + $0x8] sm:$0xf]
        %v418 = vld [vmem:[%s380 + $0xc] sm:$0xf]
        %v419 = vld [vmem:[%s380 + $0x10] sm:$0xf]
        %v420 = vld [vmem:[%s380 + $0x14] sm:$0xf]
        %v421 = vld [vmem:[%s380 + $0x18] sm:$0xf]
        %v422 = vld [vmem:[%s380 + $0x1c] sm:$0xf]
        %v423 = vld [vmem:[%s380 + $0x20] sm:$0xf]
        %v424 = vld [vmem:[%s380 + $0x24] sm:$0xf]
        %v425 = vld [vmem:[%s380 + $0x28] sm:$0xf]
        %v426 = vld [vmem:[%s380 + $0x2c] sm:$0xf]
        %v427 = vld [vmem:[%s380 + $0x30] sm:$0xf]
        %v428 = vld [vmem:[%s338] sm:$0xf]
        %v429 = vld [vmem:[%s338 + $0x4] sm:$0xf]
        %v430 = vld [vmem:[%s338 + $0x8] sm:$0xf]
        %v431 = vld [vmem:[%s338 + $0xc] sm:$0xf]
        %v432 = vld [vmem:[%s338 + $0x10] sm:$0xf]
        %v433 = vld [vmem:[%s338 + $0x14] sm:$0xf]
        %v434 = vld [vmem:[%s338 + $0x18] sm:$0xf]
        %v435 = vld [vmem:[%s338 + $0x1c] sm:$0xf]
        %v436 = vld [vmem:[%s338 + $0x20] sm:$0xf]
        %v437 = vld [vmem:[%s338 + $0x24] sm:$0xf]
        %v438 = vld [vmem:[%s338 + $0x28] sm:$0xf]
        %v439 = vld [vmem:[%s338 + $0x2c] sm:$0xf]
        %v440 = vld [vmem:[%s338 + $0x30] sm:$0xf]
        %v441 = vld [vmem:[%s338 + $0x34] sm:$0xf]
        %v442 = vld [vmem:[%s338 + $0x38] sm:$0xf]
        %v443 = vld [vmem:[%s338 + $0x3c] sm:$0xf]
        %v444 = vld [vmem:[%s384] sm:$0x1]
        %v446 = vlaneseq
        %v447 = vshrl.u32 %v446, 7
        %v448 = vsub.s32 0, %v447
        %v449 = vrot.slane %v444, %v448
        %v464 = vunpack.c.l.b16 %v415
        %v465 = vunpack.c.l.b16 %v416
        %v466 = vunpack.c.l.b16 %v417
        %v467 = vunpack.c.l.b16 %v418
        %v468 = vunpack.c.l.b16 %v419
        %v469 = vunpack.c.l.b16 %v420
        %v470 = vunpack.c.l.b16 %v421
        %v471 = vunpack.c.l.b16 %v422
        %v472 = vunpack.c.l.b16 %v423
        %v473 = vunpack.c.l.b16 %v424
        %v474 = vunpack.c.l.b16 %v425
        %v475 = vunpack.c.l.b16 %v426
        %v476 = vunpack.c.l.b16 %v427
        %v477 = vpack.c.b16 %v465, %v464
        %v478 = vpack.c.b16 %v467, %v466
        %v479 = vpack.c.b16 %v469, %v468
        %v480 = vpack.c.b16 %v471, %v470
        %v481 = vpack.c.b16 %v473, %v472
        %v482 = vpack.c.b16 %v475, %v474
        %v483 = vpack.c.b16 %v476, %v476
        %v507 = vunpack.c.l.b16 %v428
        %v508 = vunpack.c.l.b16 %v429
        %v509 = vunpack.c.l.b16 %v430
        %v510 = vunpack.c.l.b16 %v431
        %v511 = vunpack.c.l.b16 %v432
        %v512 = vunpack.c.l.b16 %v433
        %v513 = vunpack.c.l.b16 %v434
        %v514 = vunpack.c.l.b16 %v435
        %v515 = vunpack.c.l.b16 %v436
        %v516 = vunpack.c.l.b16 %v437
        %v517 = vunpack.c.l.b16 %v438
        %v518 = vunpack.c.l.b16 %v439
        %v519 = vunpack.c.l.b16 %v440
        %v520 = vunpack.c.l.b16 %v441
        %v521 = vunpack.c.l.b16 %v442
        %v522 = vunpack.c.l.b16 %v443
        %v523 = vpack.c.b16 %v508, %v507
        %v524 = vpack.c.b16 %v510, %v509
        %v525 = vpack.c.b16 %v512, %v511
        %v526 = vpack.c.b16 %v514, %v513
        %v527 = vpack.c.b16 %v516, %v515
        %v528 = vpack.c.b16 %v518, %v517
        %v529 = vpack.c.b16 %v520, %v519
        %v530 = vpack.c.b16 %v522, %v521
        %539 = vmatprep.subr.bf16.mxu0 0
        %540 = vmatpush1.bf16.msra.mxu0 %v523
        %541 = vmatprep.subr.bf16.mxu0 0
        %542 = vmatpush1.bf16.msra.mxu0 %v524
        %543 = vmatprep.subr.bf16.mxu0 0
        %544 = vmatpush1.bf16.msra.mxu0 %v525
        %545 = vmatprep.subr.bf16.mxu0 0
        %546 = vmatpush1.bf16.msra.mxu0 %v526
        %547 = vmatprep.subr.bf16.mxu0 0
        %548 = vmatpush1.bf16.msra.mxu0 %v527
        %549 = vmatprep.subr.bf16.mxu0 0
        %550 = vmatpush1.bf16.msra.mxu0 %v528
        %551 = vmatprep.subr.bf16.mxu0 0
        %552 = vmatpush1.bf16.msra.mxu0 %v529
        %553 = vmatprep.subr.bf16.mxu0 0
        %554 = vmatpush1.bf16.msra.mxu0 %v530
        %555 = vmatprep.subr.bf16.mxu0 0
        %556 = vmatpush1.bf16.msra.mxu0 0
        %557 = vmatprep.subr.bf16.mxu0 0
        %558 = vmatpush1.bf16.msra.mxu0 0
        %559 = vmatprep.subr.bf16.mxu0 0
        %560 = vmatpush1.bf16.msra.mxu0 0
        %561 = vmatprep.subr.bf16.mxu0 0
        %562 = vmatpush1.bf16.msra.mxu0 0
        %563 = vmatprep.subr.bf16.mxu0 0
        %564 = vmatpush1.bf16.msra.mxu0 0
        %565 = vmatprep.subr.bf16.mxu0 0
        %566 = vmatpush1.bf16.msra.mxu0 0
        %567 = vmatprep.subr.bf16.mxu0 0
        %568 = vmatpush1.bf16.msra.mxu0 0
        %569 = vmatprep.subr.bf16.mxu0 0
        %570 = vmatpush1.bf16.msra.mxu0 0
        %571 = vmatprep.mubr.bf16.mxu0 0
        %572 = vmatmul.mubr.bf16.gmra.mrb[0].mxu0 %v477
        %v573 = vpop.f32.mrb[0].mxu0
        %v574 = vadd.f32 %v449, %v573
        %v575 = vpop.f32.mrb[0].mxu0
        %v576 = vpop.f32.mrb[0].mxu0
        %v577 = vadd.f32 %v449, %v576
        %v578 = vpop.f32.mrb[0].mxu0
        %579 = vmatprep.mubr.bf16.mxu0 0
        %580 = vmatmul.mubr.bf16.gmra.mrb[0].mxu0 %v478
        %v581 = vpop.f32.mrb[0].mxu0
        %v582 = vadd.f32 %v449, %v581
        %v583 = vpop.f32.mrb[0].mxu0
        %v584 = vpop.f32.mrb[0].mxu0
        %v585 = vadd.f32 %v449, %v584
        %v586 = vpop.f32.mrb[0].mxu0
        %587 = vmatprep.mubr.bf16.mxu0 0
        %588 = vmatmul.mubr.bf16.gmra.mrb[0].mxu0 %v479
        %v589 = vpop.f32.mrb[0].mxu0
        %v590 = vadd.f32 %v449, %v589
        %v591 = vpop.f32.mrb[0].mxu0
        %v592 = vpop.f32.mrb[0].mxu0
        %v593 = vadd.f32 %v449, %v592
        %v594 = vpop.f32.mrb[0].mxu0
        %595 = vmatprep.mubr.bf16.mxu0 0
        %596 = vmatmul.mubr.bf16.gmra.mrb[0].mxu0 %v480
        %v597 = vpop.f32.mrb[0].mxu0
        %v598 = vadd.f32 %v449, %v597
        %v599 = vpop.f32.mrb[0].mxu0
        %v600 = vpop.f32.mrb[0].mxu0
        %v601 = vadd.f32 %v449, %v600
        %v602 = vpop.f32.mrb[0].mxu0
        %603 = vmatprep.mubr.bf16.mxu0 0
        %604 = vmatmul.mubr.bf16.gmra.mrb[0].mxu0 %v481
        %v605 = vpop.f32.mrb[0].mxu0
        %v606 = vadd.f32 %v449, %v605
        %v607 = vpop.f32.mrb[0].mxu0
        %v608 = vpop.f32.mrb[0].mxu0
        %v609 = vadd.f32 %v449, %v608
        %v610 = vpop.f32.mrb[0].mxu0
        %611 = vmatprep.mubr.bf16.mxu0 0
        %612 = vmatmul.mubr.bf16.gmra.mrb[0].mxu0 %v482
        %v613 = vpop.f32.mrb[0].mxu0
        %v614 = vadd.f32 %v449, %v613
        %v615 = vpop.f32.mrb[0].mxu0
        %v616 = vpop.f32.mrb[0].mxu0
        %v617 = vadd.f32 %v449, %v616
        %v618 = vpop.f32.mrb[0].mxu0
        %619 = vmatprep.mubr.bf16.mxu0 0
        %620 = vmatmul.mubr.bf16.gmra.mrb[0].mxu0 %v483
        %v621 = vpop.f32.mrb[0].mxu0
        %v622 = vadd.f32 %v449, %v621
        %v623 = vpop.f32.mrb[0].mxu0
        %v624 = vpop.f32.mrb[0].mxu0
        %v625 = vpop.f32.mrb[0].mxu0
        %626 = vdwg.mxu0
        %v627 = vmax.f32 %v574, 0.0
        %v628 = vmax.f32 %v577, 0.0
        %v629 = vmax.f32 %v582, 0.0
        %v630 = vmax.f32 %v585, 0.0
        %v631 = vmax.f32 %v590, 0.0
        %v632 = vmax.f32 %v593, 0.0
        %v633 = vmax.f32 %v598, 0.0
        %v634 = vmax.f32 %v601, 0.0
        %v635 = vmax.f32 %v606, 0.0
        %v636 = vmax.f32 %v609, 0.0
        %v637 = vmax.f32 %v614, 0.0
        %v638 = vmax.f32 %v617, 0.0
        %v639 = vmax.f32 %v622, 0.0
        %v640 = vld [vmem:[#allocation2] sm:$0xff]
        %v641 = vld [vmem:[#allocation2 + $0x8] sm:$0xff]
        %v642 = vld [vmem:[#allocation2 + $0x10] sm:$0xff]
        %v643 = vld [vmem:[#allocation2 + $0x18] sm:$0xff]
        %v644 = vld [vmem:[#allocation2 + $0x20] sm:$0xff]
        %v645 = vld [vmem:[#allocation2 + $0x28] sm:$0xff]
        %v646 = vld [vmem:[#allocation2 + $0x30] sm:$0xff]
        %v647 = vld [vmem:[#allocation2 + $0x38] sm:$0xff]
        %v648 = vld [vmem:[#allocation2 + $0x40] sm:$0xff]
        %v649 = vld [vmem:[#allocation2 + $0x48] sm:$0xff]
        %v650 = vld [vmem:[#allocation2 + $0x50] sm:$0xff]
        %v651 = vld [vmem:[#allocation2 + $0x58] sm:$0xff]
        %v652 = vld [vmem:[#allocation2 + $0x60] sm:$0xff]
        %v653 = vpack.c.bf16 %v628, %v627
        %v654 = vpack.c.bf16 %v630, %v629
        %v655 = vpack.c.bf16 %v632, %v631
        %v656 = vpack.c.bf16 %v634, %v633
        %v657 = vpack.c.bf16 %v636, %v635
        %v658 = vpack.c.bf16 %v638, %v637
        %v659 = vpack.c.bf16 %v639, %v639
        %v660 = vld [vmem:[%s389] sm:$0xf]
        %v661 = vld [vmem:[%s389 + $0x4] sm:$0xf]
        %v662 = vld [vmem:[%s389 + $0x8] sm:$0xf]
        %v663 = vld [vmem:[%s389 + $0xc] sm:$0xf]
        %v664 = vld [vmem:[%s389 + $0x10] sm:$0xf]
        %v665 = vld [vmem:[%s389 + $0x14] sm:$0xf]
        %v666 = vld [vmem:[%s389 + $0x18] sm:$0xf]
        %v667 = vld [vmem:[%s389 + $0x1c] sm:$0xf]
        %v668 = vld [vmem:[%s389 + $0x20] sm:$0xf]
        %v669 = vld [vmem:[%s389 + $0x24] sm:$0xf]
        %v670 = vld [vmem:[%s389 + $0x28] sm:$0xf]
        %v671 = vld [vmem:[%s389 + $0x2c] sm:$0xf]
        %v672 = vld [vmem:[%s389 + $0x30] sm:$0xf]
        %v673 = vld [vmem:[%s389 + $0x34] sm:$0xf]
        %v674 = vld [vmem:[%s389 + $0x38] sm:$0xf]
        %v675 = vld [vmem:[%s389 + $0x3c] sm:$0xf]
        %v692 = vunpack.c.l.b16 %v660
        %v693 = vunpack.c.l.b16 %v661
        %v694 = vunpack.c.l.b16 %v662
        %v695 = vunpack.c.l.b16 %v663
        %v696 = vunpack.c.l.b16 %v664
        %v697 = vunpack.c.l.b16 %v665
        %v698 = vunpack.c.l.b16 %v666
        %v699 = vunpack.c.l.b16 %v667
        %v700 = vunpack.c.l.b16 %v668
        %v701 = vunpack.c.l.b16 %v669
        %v702 = vunpack.c.l.b16 %v670
        %v703 = vunpack.c.l.b16 %v671
        %v704 = vunpack.c.l.b16 %v672
        %v705 = vunpack.c.l.b16 %v673
        %v706 = vunpack.c.l.b16 %v674
        %v707 = vunpack.c.l.b16 %v675
        %v708 = vpack.c.b16 %v693, %v692
        %v709 = vpack.c.b16 %v695, %v694
        %v710 = vpack.c.b16 %v697, %v696
        %v711 = vpack.c.b16 %v699, %v698
        %v712 = vpack.c.b16 %v701, %v700
        %v713 = vpack.c.b16 %v703, %v702
        %v714 = vpack.c.b16 %v705, %v704
        %v715 = vpack.c.b16 %v707, %v706
        %724 = vmatprep.subr.bf16.mxu0 0
        %725 = vmatpush1.bf16.msra.mxu0 %v708
        %726 = vmatprep.subr.bf16.mxu0 0
        %727 = vmatpush1.bf16.msra.mxu0 %v709
        %728 = vmatprep.subr.bf16.mxu0 0
        %729 = vmatpush1.bf16.msra.mxu0 %v710
        %730 = vmatprep.subr.bf16.mxu0 0
        %731 = vmatpush1.bf16.msra.mxu0 %v711
        %732 = vmatprep.subr.bf16.mxu0 0
        %733 = vmatpush1.bf16.msra.mxu0 %v712
        %734 = vmatprep.subr.bf16.mxu0 0
        %735 = vmatpush1.bf16.msra.mxu0 %v713
        %736 = vmatprep.subr.bf16.mxu0 0
        %737 = vmatpush1.bf16.msra.mxu0 %v714
        %738 = vmatprep.subr.bf16.mxu0 0
        %739 = vmatpush1.bf16.msra.mxu0 %v715
        %740 = vmatprep.subr.bf16.mxu0 0
        %741 = vmatpush1.bf16.msra.mxu0 0
        %742 = vmatprep.subr.bf16.mxu0 0
        %743 = vmatpush1.bf16.msra.mxu0 0
        %744 = vmatprep.subr.bf16.mxu0 0
        %745 = vmatpush1.bf16.msra.mxu0 0
        %746 = vmatprep.subr.bf16.mxu0 0
        %747 = vmatpush1.bf16.msra.mxu0 0
        %748 = vmatprep.subr.bf16.mxu0 0
        %749 = vmatpush1.bf16.msra.mxu0 0
        %750 = vmatprep.subr.bf16.mxu0 0
        %751 = vmatpush1.bf16.msra.mxu0 0
        %752 = vmatprep.subr.bf16.mxu0 0
        %753 = vmatpush1.bf16.msra.mxu0 0
        %754 = vmatprep.subr.bf16.mxu0 0
        %755 = vmatpush1.bf16.msra.mxu0 0
        %756 = vmatprep.mubr.bf16.mxu0 0
        %757 = vmatmul.mubr.bf16.gmra.mrb[0].mxu0 %v653
        %v758 = vpop.f32.mrb[0].mxu0
        %v759 = vadd.f32 0.0, %v758
        %v760 = vpop.f32.mrb[0].mxu0
        %v761 = vpop.f32.mrb[0].mxu0
        %v762 = vadd.f32 0.0, %v761
        %v763 = vpop.f32.mrb[0].mxu0
        %764 = vmatprep.mubr.bf16.mxu0 0
        %765 = vmatmul.mubr.bf16.gmra.mrb[0].mxu0 %v654
        %v766 = vpop.f32.mrb[0].mxu0
        %v767 = vadd.f32 0.0, %v766
        %v768 = vpop.f32.mrb[0].mxu0
        %v769 = vpop.f32.mrb[0].mxu0
        %v770 = vadd.f32 0.0, %v769
        %v771 = vpop.f32.mrb[0].mxu0
        %772 = vmatprep.mubr.bf16.mxu0 0
        %773 = vmatmul.mubr.bf16.gmra.mrb[0].mxu0 %v655
        %v774 = vpop.f32.mrb[0].mxu0
        %v775 = vadd.f32 0.0, %v774
        %v776 = vpop.f32.mrb[0].mxu0
        %v777 = vpop.f32.mrb[0].mxu0
        %v778 = vadd.f32 0.0, %v777
        %v779 = vpop.f32.mrb[0].mxu0
        %780 = vmatprep.mubr.bf16.mxu0 0
        %781 = vmatmul.mubr.bf16.gmra.mrb[0].mxu0 %v656
        %v782 = vpop.f32.mrb[0].mxu0
        %v783 = vadd.f32 0.0, %v782
        %v784 = vpop.f32.mrb[0].mxu0
        %v785 = vpop.f32.mrb[0].mxu0
        %v786 = vadd.f32 0.0, %v785
        %v787 = vpop.f32.mrb[0].mxu0
        %788 = vmatprep.mubr.bf16.mxu0 0
        %789 = vmatmul.mubr.bf16.gmra.mrb[0].mxu0 %v657
        %v790 = vpop.f32.mrb[0].mxu0
        %v791 = vadd.f32 0.0, %v790
        %v792 = vpop.f32.mrb[0].mxu0
        %v793 = vpop.f32.mrb[0].mxu0
        %v794 = vadd.f32 0.0, %v793
        %v795 = vpop.f32.mrb[0].mxu0
        %796 = vmatprep.mubr.bf16.mxu0 0
        %797 = vmatmul.mubr.bf16.gmra.mrb[0].mxu0 %v658
        %v798 = vpop.f32.mrb[0].mxu0
        %v799 = vadd.f32 0.0, %v798
        %v800 = vpop.f32.mrb[0].mxu0
        %v801 = vpop.f32.mrb[0].mxu0
        %v802 = vadd.f32 0.0, %v801
        %v803 = vpop.f32.mrb[0].mxu0
        %804 = vmatprep.mubr.bf16.mxu0 0
        %805 = vmatmul.mubr.bf16.gmra.mrb[0].mxu0 %v659
        %v806 = vpop.f32.mrb[0].mxu0
        %v807 = vadd.f32 0.0, %v806
        %v808 = vpop.f32.mrb[0].mxu0
        %v809 = vpop.f32.mrb[0].mxu0
        %v810 = vpop.f32.mrb[0].mxu0
        %811 = vdwg.mxu0
        %v812 = vadd.f32 %v640, %v759
        %v813 = vadd.f32 %v641, %v762
        %v814 = vadd.f32 %v642, %v767
        %v815 = vadd.f32 %v643, %v770
        %v816 = vadd.f32 %v644, %v775
        %v817 = vadd.f32 %v645, %v778
        %v818 = vadd.f32 %v646, %v783
        %v819 = vadd.f32 %v647, %v786
        %v820 = vadd.f32 %v648, %v791
        %v821 = vadd.f32 %v649, %v794
        %v822 = vadd.f32 %v650, %v799
        %v823 = vadd.f32 %v651, %v802
        %v824 = vadd.f32 %v652, %v807
        %825 = vst [vmem:[#allocation2] sm:$0xff] %v812
        %826 = vst [vmem:[#allocation2 + $0x8] sm:$0xff] %v813
        %827 = vst [vmem:[#allocation2 + $0x10] sm:$0xff] %v814
        %828 = vst [vmem:[#allocation2 + $0x18] sm:$0xff] %v815
        %829 = vst [vmem:[#allocation2 + $0x20] sm:$0xff] %v816
        %830 = vst [vmem:[#allocation2 + $0x28] sm:$0xff] %v817
        %831 = vst [vmem:[#allocation2 + $0x30] sm:$0xff] %v818
        %832 = vst [vmem:[#allocation2 + $0x38] sm:$0xff] %v819
        %833 = vst [vmem:[#allocation2 + $0x40] sm:$0xff] %v820
        %834 = vst [vmem:[#allocation2 + $0x48] sm:$0xff] %v821
        %835 = vst [vmem:[#allocation2 + $0x50] sm:$0xff] %v822
        %836 = vst [vmem:[#allocation2 + $0x58] sm:$0xff] %v823
        %837 = vst [vmem:[#allocation2 + $0x60] sm:$0xff] %v824
        %p838 = scmp.eq.s32.totalorder %s21, 2
        // Predicated region
        $region86: #{mlp_forward_prepared.1} parent=76 // pred_check
          %p839 = pneg %p838
        $region87: #{mlp_forward_prepared.1} parent=76 // pred_check_branch
          %841 = sbr.rel (%p839) target = $region89
        $region88: #{mlp_forward_prepared.1} parent=76 // pred_region
          %v842 = vld [vmem:[#allocation2] sm:$0xff]
          %v843 = vld [vmem:[#allocation2 + $0x8] sm:$0xff]
          %v844 = vld [vmem:[#allocation2 + $0x10] sm:$0xff]
          %v845 = vld [vmem:[#allocation2 + $0x18] sm:$0xff]
          %v846 = vld [vmem:[#allocation2 + $0x20] sm:$0xff]
          %v847 = vld [vmem:[#allocation2 + $0x28] sm:$0xff]
          %v848 = vld [vmem:[#allocation2 + $0x30] sm:$0xff]
          %v849 = vld [vmem:[#allocation2 + $0x38] sm:$0xff]
          %v850 = vld [vmem:[#allocation2 + $0x40] sm:$0xff]
          %v851 = vld [vmem:[#allocation2 + $0x48] sm:$0xff]
          %v852 = vld [vmem:[#allocation2 + $0x50] sm:$0xff]
          %v853 = vld [vmem:[#allocation2 + $0x58] sm:$0xff]
          %v854 = vld [vmem:[#allocation2 + $0x60] sm:$0xff]
          %v855 = vld [vmem:[%s4] sm:$0x1]
          %v857 = vlaneseq
          %v858 = vshrl.u32 %v857, 7
          %v859 = vsub.s32 0, %v858
          %v860 = vrot.slane %v855, %v859
          %v862 = vadd.f32 %v842, %v860
          %v863 = vadd.f32 %v843, %v860
          %v864 = vadd.f32 %v844, %v860
          %v865 = vadd.f32 %v845, %v860
          %v866 = vadd.f32 %v846, %v860
          %v867 = vadd.f32 %v847, %v860
          %v868 = vadd.f32 %v848, %v860
          %v869 = vadd.f32 %v849, %v860
          %v870 = vadd.f32 %v850, %v860
          %v871 = vadd.f32 %v851, %v860
          %v872 = vadd.f32 %v852, %v860
          %v873 = vadd.f32 %v853, %v860
          %v874 = vadd.f32 %v854, %v860
          %875 = vst [vmem:[%s395] sm:$0xff] %v862
          %876 = vst [vmem:[%s395 + $0x8] sm:$0xff] %v863
          %877 = vst [vmem:[%s395 + $0x10] sm:$0xff] %v864
          %878 = vst [vmem:[%s395 + $0x18] sm:$0xff] %v865
          %879 = vst [vmem:[%s395 + $0x20] sm:$0xff] %v866
          %880 = vst [vmem:[%s395 + $0x28] sm:$0xff] %v867
          %881 = vst [vmem:[%s395 + $0x30] sm:$0xff] %v868
          %882 = vst [vmem:[%s395 + $0x38] sm:$0xff] %v869
          %883 = vst [vmem:[%s395 + $0x40] sm:$0xff] %v870
          %884 = vst [vmem:[%s395 + $0x48] sm:$0xff] %v871
          %885 = vst [vmem:[%s395 + $0x50] sm:$0xff] %v872
          %886 = vst [vmem:[%s395 + $0x58] sm:$0xff] %v873
          %887 = vst [vmem:[%s395 + $0x60] sm:$0xff] %v874
        $region89: #{mlp_forward_prepared.1} parent=76 // pred_fallthru
          _
        %s888 = smul.u32 13, %s20
        %p889 = scmp.lt.s32.totalorder %s888, 25
        %s890 = scalar_select %p889, %s888, 25
        %s891 = smul.addr %s890, 8
        %s892 = scalar_lea.vmem %s5, %s891
        // Predicated region
        $region90: #{mlp_forward_prepared.1} parent=76 // pred_check
          %p893 = pneg %p171
        $region91: #{mlp_forward_prepared.1} parent=76 // pred_check_branch
          %895 = sbr.rel (%p893) target = $region93
        $region92: #{mlp_forward_prepared.1} parent=76 // pred_region
          %s896 = smul.u32 13, %s20
        $region93: #{mlp_forward_prepared.1} parent=76 // pred_fallthru
          _
      $region77: #{mlp_forward_prepared.1} parent=5 // pred_fallthru
        _
      %p897 = scmp.le.s32.totalorder 2, %s11
      // Predicated region
      $region94: #{mlp_forward_prepared.1} parent=5 // pred_check
        %p898 = pneg %p897
      $region95: #{mlp_forward_prepared.1} parent=5 // pred_check_branch
        %900 = sbr.rel (%p898) target = $region97
      $region96: #{mlp_forward_prepared.1} parent=5 // pred_region
        %s901 = ssub.s32 %s11, 2
        // Predicated region
        $region98: #{mlp_forward_prepared.1} parent=96 // pred_check
          %p902 = pneg %p177
        $region99: #{mlp_forward_prepared.1} parent=96 // pred_check_branch
          %904 = sbr.rel (%p902) target = $region101
        $region100: #{mlp_forward_prepared.1} parent=96 // pred_region
          %s905 = smul.u32 13, %s22
          %p906 = scmp.lt.s32.totalorder %s905, 25
          %s907 = scalar_select %p906, %s905, 25
          %s908 = smul.addr %s907, 8
          %s909 = scalar_lea.vmem %s5, %s908
        $region101: #{mlp_forward_prepared.1} parent=96 // pred_fallthru
          _
      $region97: #{mlp_forward_prepared.1} parent=5 // pred_fallthru
        _
    $region6: #{mlp_forward_prepared.1} parent=1 // loop_footer
      %s15 = sadd.s32 1, %s11
    $region7: #{mlp_forward_prepared.1} parent=1 // loop_footer_branch
      %10 = sbr.rel target = $region3
    $region8: #{mlp_forward_prepared.1} parent=1 // loop_exit
      _

</llo_original>
